<compile_context>
chip_gen: v6e
topology: v6e:2x2x1
jax: 0.10.0
libtpu: 0.0.40
codegen_flags: <defaults>
</compile_context>

<pallas_src>
import jax
import jax.numpy as jnp
from jax.experimental import pallas as pl
from jax.experimental.pallas import tpu as pltpu

_BLOCK_BUDGET_BYTES = 4 * 1024 * 1024      # target bytes per (padded) block
_VMEM_LIMIT_BYTES = 48 * 1024 * 1024       # scoped VMEM: safe on v5e/v6e/v7x
_PALLAS_MIN_ELEMENTS = 256 * 1024          # below this, fused XLA add wins
_LANE = 128


def _add_bias_kernel(x_ref, b_ref, o_ref):
    # (TM, TL) + (1, TL) or (TM, 1) broadcast add on the VPU.
    o_ref[...] = x_ref[...] + b_ref[...]


def _round_up(x, m):
    return ((x + m - 1) // m) * m


def _even_tile(dim, max_tile, align):
    """Split `dim` into the minimum number of blocks of size <= max_tile,
    sized evenly (rounded up to `align`) to avoid tiny remainder blocks."""
    max_tile = max(align, (max_tile // align) * align)
    if dim <= max_tile:
        return dim
    n_blocks = -(-dim // max_tile)                 # ceil
    return min(max_tile, _round_up(-(-dim // n_blocks), align))


def _pick_tiles(R, L, dtype):
    """Pick (tm, tl) so the padded block is ~_BLOCK_BUDGET_BYTES."""
    itemsize = jnp.dtype(dtype).itemsize
    sub_align = {4: 8, 2: 16, 1: 32}.get(itemsize, 8)
    budget = max(_BLOCK_BUDGET_BYTES // itemsize, sub_align * _LANE)  # elems
    R_pad = _round_up(R, sub_align)
    L_pad = _round_up(L, _LANE)

    if R_pad * L_pad <= budget:                    # whole array in one block
        return R, L
    if L_pad * sub_align <= budget:                # keep lanes full, split rows
        tm_max = (budget // L_pad) // sub_align * sub_align
        return _even_tile(R, tm_max, sub_align), L
    if R_pad * _LANE <= budget:                    # keep rows full, split lanes
        tl_max = (budget // R_pad) // _LANE * _LANE
        return R, _even_tile(L, tl_max, _LANE)
    # Both axes huge: split both (rows capped so lane DMAs stay long).
    tm = _even_tile(R, min(R_pad, 512), sub_align)
    tl_max = max(_LANE, (budget // _round_up(tm, sub_align)) // _LANE * _LANE)
    return tm, _even_tile(L, tl_max, _LANE)


def _pallas_broadcast_add(x2d, b2d, donate=False):
    """x2d: (R, L).  b2d: (1, L) bias row or (R, 1) bias column."""
    R, L = x2d.shape
    bias_is_row = (b2d.shape[0] == 1)
    tm, tl = _pick_tiles(R, L, x2d.dtype)
    n_r, n_l = pl.cdiv(R, tm), pl.cdiv(L, tl)

    if n_l == 1:
        # 1-D grid over row blocks (the only splittable axis leads).
        grid = (n_r,)
        x_spec = pl.BlockSpec((tm, L), lambda i: (i, 0))
        b_spec = (pl.BlockSpec((1, L), lambda i: (0, 0)) if bias_is_row
                  else pl.BlockSpec((tm, 1), lambda i: (i, 0)))
        o_spec = pl.BlockSpec((tm, L), lambda i: (i, 0))
        dims = ("parallel",)
    elif n_r == 1:
        # 1-D grid over lane blocks.
        grid = (n_l,)
        x_spec = pl.BlockSpec((R, tl), lambda j: (0, j))
        b_spec = (pl.BlockSpec((1, tl), lambda j: (0, j)) if bias_is_row
                  else pl.BlockSpec((R, 1), lambda j: (0, 0)))
        o_spec = pl.BlockSpec((R, tl), lambda j: (0, j))
        dims = ("parallel",)
    elif bias_is_row:
        # 2-D grid: lane axis leading, row axis innermost so the bias block
        # index (0, j) is constant across the inner axis (no refetch).
        grid = (n_l, n_r)
        x_spec = pl.BlockSpec((tm, tl), lambda j, i: (i, j))
        b_spec = pl.BlockSpec((1, tl), lambda j, i: (0, j))
        o_spec = pl.BlockSpec((tm, tl), lambda j, i: (i, j))
        dims = ("parallel", "parallel")
    else:
        # Column bias: row axis leading, lane axis innermost so (i, 0) is
        # constant across the inner axis.
        grid = (n_r, n_l)
        x_spec = pl.BlockSpec((tm, tl), lambda i, j: (i, j))
        b_spec = pl.BlockSpec((tm, 1), lambda i, j: (i, 0))
        o_spec = pl.BlockSpec((tm, tl), lambda i, j: (i, j))
        dims = ("parallel", "parallel")

    call_kwargs = {}
    if donate:
        call_kwargs["input_output_aliases"] = {0: 0}

    return pl.pallas_call(
        _add_bias_kernel,
        out_shape=jax.ShapeDtypeStruct((R, L), x2d.dtype),
        grid_spec=pltpu.PrefetchScalarGridSpec(
            num_scalar_prefetch=0,
            grid=grid,
            in_specs=[x_spec, b_spec],
            out_specs=o_spec,
        ),
        compiler_params=pltpu.CompilerParams(
            dimension_semantics=dims,
            vmem_limit_bytes=_VMEM_LIMIT_BYTES,
        ),
        **call_kwargs,
    )(x2d, b2d)


def _should_use_pallas(x, use_pallas):
    if use_pallas is not None:
        return use_pallas
    return x.size >= _PALLAS_MIN_ELEMENTS


def add_bias(x, bias_param, use_pallas=None, donate_x=False):
    """Pallas equivalent of AddBias.forward.

    bias_param: shape (C, 1), matching nn.Parameter(bias.unsqueeze(1)).
    use_pallas: None = auto (size-gated), True/False = force.
    donate_x  : if True, x is donated to the output (in-place add).  Only set
                this when the caller does not reuse x afterwards.
    """
    bias_flat = bias_param.reshape(-1).astype(x.dtype)       # (C,)
    if x.ndim == 2:
        _, C = x.shape
        b_row = bias_flat.reshape(1, C)
        if not _should_use_pallas(x, use_pallas):
            return x + b_row
        return _pallas_broadcast_add(x, b_row, donate=donate_x)
    elif x.ndim == 4:
        N, C, H, W = x.shape
        if not _should_use_pallas(x, use_pallas):
            return x + bias_flat.reshape(1, C, 1, 1)
        if (H * W) % _LANE == 0:
            # Lane-dense (N*C, H*W) view + per-row (N*C, 1) bias column: no
            # repeated full-size bias row, and the tiler gets N*C rows.
            x2 = x.reshape(N * C, H * W)
            b_col = jnp.tile(bias_flat, (N,)).reshape(N * C, 1)
            out2 = _pallas_broadcast_add(x2, b_col, donate=donate_x)
            return out2.reshape(N, C, H, W)
        # Fallback: (N, C*H*W) view with repeated (1, C*H*W) bias row so the
        # output stores stay lane-dense / unmasked.
        x2 = x.reshape(N, C * H * W)
        b_row = jnp.repeat(bias_flat, H * W).reshape(1, C * H * W)
        out2 = _pallas_broadcast_add(x2, b_row, donate=donate_x)
        return out2.reshape(N, C, H, W)
    else:
        raise ValueError("AddBias expects 2-D or 4-D input")


if __name__ == "__main__":
    key = jax.random.PRNGKey(0)
    k_b, k_x4, k_x2, k_bb, k_xb, k_bc, k_xc, k_bo, k_xo = jax.random.split(key, 9)

    C = 4
    # Deterministic parameter init: bias (C,), stored as (C, 1) like the Parameter.
    bias = jax.random.normal(k_b, (C,), dtype=jnp.float32)
    bias_param = bias.reshape(C, 1)

    # 4-D case (NCHW), small module-consistent shape.  Auto-dispatch (XLA add
    # at this size) plus forced-Pallas run (column-bias path, single block).
    x4 = jax.random.normal(k_x4, (2, C, 16, 16), dtype=jnp.float32)
    ref4 = x4 + bias.reshape(1, C, 1, 1)
    out4_auto = jax.block_until_ready(add_bias(x4, bias_param))
    out4_pl = jax.block_until_ready(add_bias(x4, bias_param, use_pallas=True))

    # 2-D case (B, C), tiny RL case: auto (XLA) + forced Pallas.
    x2 = jax.random.normal(k_x2, (8, C), dtype=jnp.float32)
    ref2 = x2 + bias.reshape(1, C)
    out2_auto = jax.block_until_ready(add_bias(x2, bias_param))
    out2_pl = jax.block_until_ready(add_bias(x2, bias_param, use_pallas=True))

    # 2-D row-bias path with multiple row blocks (byte-budget tiling).
    Cb = 1536
    bias_b = jax.random.normal(k_bb, (Cb,), dtype=jnp.float32)
    x_big = jax.random.normal(k_xb, (2048, Cb), dtype=jnp.float32)
    ref_big = x_big + bias_b.reshape(1, Cb)
    out_big = jax.block_until_ready(
        add_bias(x_big, bias_b.reshape(Cb, 1), use_pallas=True))

    # 4-D column-bias path with multiple row blocks (auto-dispatches to Pallas).
    Cc = 64
    bias_c = jax.random.normal(k_bc, (Cc,), dtype=jnp.float32)
    x_conv = jax.random.normal(k_xc, (32, Cc, 32, 32), dtype=jnp.float32)
    ref_conv = x_conv + bias_c.reshape(1, Cc, 1, 1)
    out_conv = jax.block_until_ready(add_bias(x_conv, bias_c.reshape(Cc, 1)))

    # 4-D fallback path (H*W not lane-aligned), forced Pallas.
    bias_o = jax.random.normal(k_bo, (C,), dtype=jnp.float32)
    x_odd = jax.random.normal(k_xo, (2, C, 10, 10), dtype=jnp.float32)
    ref_odd = x_odd + bias_o.reshape(1, C, 1, 1)
    out_odd = jax.block_until_ready(
        add_bias(x_odd, bias_o.reshape(C, 1), use_pallas=True))

    for out, ref in ((out4_auto, ref4), (out4_pl, ref4),
                     (out2_auto, ref2), (out2_pl, ref2),
                     (out_big, ref_big), (out_conv, ref_conv),
                     (out_odd, ref_odd)):
        assert out.shape == ref.shape and out.dtype == ref.dtype
        assert jnp.allclose(out, ref, atol=1e-6, rtol=1e-6)

    print("KERNEL_OK")
</pallas_src>

<mosaic_0001>
module attributes {stable_mosaic.version = 11 : i64} {
  func.func @_add_bias_kernel(%arg0: i32, %arg1: memref<8x256xf32, #tpu.memory_space<vmem>>, %arg2: memref<8x1xf32, #tpu.memory_space<vmem>>, %arg3: memref<8x256xf32, #tpu.memory_space<vmem>>) attributes {dimension_semantics = [#tpu.dimension_semantics<parallel>], iteration_bounds = array<i64: 1>, scalar_prefetch = 0 : i64, scratch_operands = 0 : i64, tpu.core_type = #tpu.core_type<tc>, window_params = [{transform_indices = @transform_0, window_bounds = array<i64: 8, 256>}, {transform_indices = @transform_1, window_bounds = array<i64: 8, 1>}, {transform_indices = @transform_2, window_bounds = array<i64: 8, 256>}]} {
    %c0 = arith.constant 0 : index
    %c0_0 = arith.constant 0 : index
    %0 = vector.load %arg1[%c0, %c0_0] : memref<8x256xf32, #tpu.memory_space<vmem>>, vector<8x256xf32>
    %c0_1 = arith.constant 0 : index
    %c0_2 = arith.constant 0 : index
    %1 = vector.load %arg2[%c0_1, %c0_2] : memref<8x1xf32, #tpu.memory_space<vmem>>, vector<8x1xf32>
    %2 = vector.broadcast %1 : vector<8x1xf32> to vector<8x256xf32>
    %3 = arith.addf %0, %2 : vector<8x256xf32>
    %c0_3 = arith.constant 0 : index
    %c0_4 = arith.constant 0 : index
    %4 = vector.load %arg3[%c0_3, %c0_4] : memref<8x256xf32, #tpu.memory_space<vmem>>, vector<8x256xf32>
    tpu.vector_store %arg3[%c0_3, %c0_4], %3 {strides = array<i32>} : memref<8x256xf32, #tpu.memory_space<vmem>>, vector<8x256xf32>,
    return
  }
  func.func @transform_0(%arg0: i32) -> (i32, i32) {
    %c0_i32 = arith.constant 0 : i32
    %c0_i32_0 = arith.constant 0 : i32
    return %arg0, %c0_i32 : i32, i32
  }
  func.func @transform_1(%arg0: i32) -> (i32, i32) {
    %c0_i32 = arith.constant 0 : i32
    %c0_i32_0 = arith.constant 0 : i32
    return %arg0, %c0_i32 : i32, i32
  }
  func.func @transform_2(%arg0: i32) -> (i32, i32) {
    %c0_i32 = arith.constant 0 : i32
    %c0_i32_0 = arith.constant 0 : i32
    return %arg0, %c0_i32 : i32, i32
  }
}

</mosaic_0001>

<llo_original>
// kernel: tpu_custom_call.1
$region0: #{tpu_custom_call.1}
  #allocation0 [shape = 'u32[]', space=smem, size = 0x4, offset = 0x4, fixed_abs, tag = 'smem constant byte address 0x4 - core index']
  #allocation1 [shape = 'u32[144,128]{1,0:T(1,128)}', space=vmem, size = 0x12000, scoped, tag = 'internal scratch']
  %s0 = inlined_call_operand.hbm [shape: f32[8,256], index: 0, kind: input, shape index: {}]
  %s1 = inlined_call_operand.vmem [shape: f32[8,1], index: 1, kind: input, shape index: {}]
  %s2 = inlined_call_operand.hbm [shape: f32[8,256], index: 2, kind: output, shape index: {}]
  %s3 = sld [smem:[#allocation0]]
  $region22: #{tpu_custom_call.1} parent=0
    _
  %s5 = ssub.s32 1, %s3
  %s6 = scalar_select 0, %s5, %s3
  $region1: #{tpu_custom_call.1} parent=0
    #allocation2 [shape = 'u8[8192]{0}', space=vmem, size = 0x2000, scoped, tag = 'input window, operand 0, single buffered']
    #allocation3 [shape = 's32[1]{0}', space=sflag, size = 0x4, scoped, tag = 'scoped memory for tpu_custom_call.1']
    #allocation4 [shape = 's32[1]{0}', space=sflag, size = 0x4, scoped, tag = 'scoped memory for tpu_custom_call.1']
    #allocation5 [shape = 'u8[8192]{0}', space=vmem, size = 0x2000, scoped, tag = 'output window, operand 0, single buffered']
    %7 = vsyncpa [#allocation3], 0
    %8 = vsyncpa [#allocation4], 0
    // Predicated region
    $region2: #{tpu_custom_call.1} parent=1 // pred_check
      _
    $region3: #{tpu_custom_call.1} parent=1 // pred_check_branch
      %10 = sbr.rel (0) target = $region5
    $region4: #{tpu_custom_call.1} parent=1 // pred_region
      %s12 = ssub.s32 256, 256
      %13 = vsyncadd [#allocation3], %s12
      %s15 = sshll.u32 [#allocation2], 4
      %s16 = int_to_ptr.vmem [resolvable:$true] %s15
      %18 = dma.hbm_to_vmem [thread:$0]  %s0, 256, %s16, [#allocation3]
    $region5: #{tpu_custom_call.1} parent=1 // pred_fallthru
      _
    // Predicated region
    $region6: #{tpu_custom_call.1} parent=1 // pred_check
      _
    $region7: #{tpu_custom_call.1} parent=1 // pred_check_branch
      %20 = sbr.rel (0) target = $region9
    $region8: #{tpu_custom_call.1} parent=1 // pred_region
      _
    $region9: #{tpu_custom_call.1} parent=1 // pred_fallthru
      _
    // Predicated region
    $region10: #{tpu_custom_call.1} parent=1 // pred_check
      _
    $region11: #{tpu_custom_call.1} parent=1 // pred_check_branch
      %22 = sbr.rel (0) target = $region13
    $region12: #{tpu_custom_call.1} parent=1 // pred_region
      %23 = dma.done [#allocation3], 256
    $region13: #{tpu_custom_call.1} parent=1 // pred_fallthru
      _
    %v24 = vld [vmem:[#allocation2] sm:$0xff]
    %v25 = vld [vmem:[#allocation2 + $0x8] sm:$0xff]
    %v26 = vld [vmem:[%s1] sm:$0xff]
    %28 = vset.pattern.permute.xlu0 0
    %29 = vperm.xlu0 %28, %v26
    %v30 = vpop.permute.xlu0 %29
    %v32 = vadd.f32 %v24, %v30
    %v33 = vadd.f32 %v25, %v30
    %34 = vst [vmem:[#allocation5] sm:$0xff] %v32
    %35 = vst [vmem:[#allocation5 + $0x8] sm:$0xff] %v33
    // Predicated region
    $region14: #{tpu_custom_call.1} parent=1 // pred_check
      _
    $region15: #{tpu_custom_call.1} parent=1 // pred_check_branch
      %37 = sbr.rel (0) target = $region17
    $region16: #{tpu_custom_call.1} parent=1 // pred_region
      %s39 = ssub.s32 256, 256
      %40 = vsyncadd [#allocation4], %s39
      %s42 = sshll.u32 [#allocation5], 4
      %s43 = int_to_ptr.vmem [resolvable:$true] %s42
      %45 = dma.vmem_to_hbm [thread:$0]  %s43, 256, %s2, [#allocation4]
    $region17: #{tpu_custom_call.1} parent=1 // pred_fallthru
      _
    // Predicated region
    $region18: #{tpu_custom_call.1} parent=1 // pred_check
      _
    $region19: #{tpu_custom_call.1} parent=1 // pred_check_branch
      %47 = sbr.rel (0) target = $region21
    $region20: #{tpu_custom_call.1} parent=1 // pred_region
      %48 = dma.done [#allocation4], 256
    $region21: #{tpu_custom_call.1} parent=1 // pred_fallthru
      _
    %49 = vsyncpa [#allocation3], 1
    %50 = vsyncpa [#allocation4], 1

</llo_original>
